<compile_context>
chip_gen: v7x
topology: tpu7x:2x2x1
jax: 0.10.0
libtpu: 0.0.40
codegen_flags: <defaults>
</compile_context>

<pallas_src>
import functools

import jax
import jax.numpy as jnp
from jax.experimental import pallas as pl
from jax.experimental.pallas import tpu as pltpu


def _total_loss_kernel(logits_ref, tgt_ref, emb_ref, emb_tgt_ref,
                       total_ref, embloss_ref,
                       ce_acc, mse_acc,
                       *, lambda_embedding, lambda_classifier,
                       n_classes, n_pix, n_emb):
    b = pl.program_id(0)
    t = pl.program_id(1)
    nb = pl.num_programs(0)
    nt = pl.num_programs(1)

    @pl.when(jnp.logical_and(b == 0, t == 0))
    def _():
        ce_acc[...] = jnp.zeros_like(ce_acc)
        mse_acc[...] = jnp.zeros_like(mse_acc)

    # ---- classifier cross-entropy over this pixel tile (pixels on lanes) ----
    logits = logits_ref[0].astype(jnp.float32)            # (C, T)
    tgt = tgt_ref[0]                                       # (1, T) int32

    m = jnp.max(logits, axis=0, keepdims=True)             # (1, T) sublane reduce
    lse = m + jnp.log(jnp.sum(jnp.exp(logits - m), axis=0, keepdims=True))
    cls_iota = jax.lax.broadcasted_iota(jnp.int32, logits.shape, 0)   # (C, T)
    picked = jnp.sum(jnp.where(cls_iota == tgt, logits, 0.0),
                     axis=0, keepdims=True)                 # (1, T)
    ce_acc[...] += jnp.sum(lse - picked, axis=1, keepdims=True)       # (1, 1)

    # ---- embedding MSE over this tile (pure elementwise, lane dense) ----
    d = emb_ref[0].astype(jnp.float32) - emb_tgt_ref[0].astype(jnp.float32)  # (E, T)
    sq = d * d
    mse_acc[...] += jnp.sum(jnp.sum(sq, axis=0, keepdims=True),
                            axis=1, keepdims=True)          # (1, 1)

    @pl.when(jnp.logical_and(b == nb - 1, t == nt - 1))
    def _():
        emb_loss = (lambda_embedding / n_emb) * mse_acc[...]
        cls_loss = (lambda_classifier / (n_classes * n_pix)) * ce_acc[...]
        if lambda_embedding != 0:
            total = emb_loss + cls_loss
        else:
            total = cls_loss
        total_ref[...] = total
        embloss_ref[...] = emb_loss


def _pick_tile(hw, max_tile=2048):
    """Largest lane-dense (multiple of 128) divisor of hw that is <= max_tile."""
    if hw <= max_tile or hw % 128 != 0:
        return hw
    for t in range(max_tile - (max_tile % 128), 0, -128):
        if hw % t == 0:
            return t
    return hw


def total_loss(embedding_space, outputs, target, embedding_target,
               margin=None, return_embedding_loss=False,
               lambda_embedding=1.0, lambda_classifier=1.0):
    """JAX/Pallas equivalent of TotalLoss.forward (NCHW inputs)."""
    # TODO(synk): margin-based embedding-loss variant (margin is not None) not
    # implemented; the concrete embedding loss here is MSE and ignores `margin`.
    lambda_embedding = float(lambda_embedding) if lambda_embedding > 0 else 0.0
    lambda_classifier = float(lambda_classifier) if lambda_classifier > 0 else 0.0

    B, C, H, W = outputs.shape
    eb, ee, eh, ew = embedding_space.shape
    assert embedding_target.shape == embedding_space.shape
    # Shared pixel grid: embedding head must be spatially aligned with the
    # classifier head (true for this model family).
    assert (eb, eh, ew) == (B, H, W), "embedding spatial dims must match outputs"

    HW = H * W
    TILE = _pick_tile(HW)
    n_tiles = HW // TILE

    # Free reshapes only — no transpose, no extra HBM pass.
    logits3d = outputs.reshape(B, C, HW)
    tgt3d = target[:, 0:1, :, :].reshape(B, 1, HW).astype(jnp.int32)
    emb3d = embedding_space.reshape(B, ee, HW)
    emb_tgt3d = embedding_target.reshape(B, ee, HW)

    kernel = functools.partial(
        _total_loss_kernel,
        lambda_embedding=lambda_embedding,
        lambda_classifier=lambda_classifier,
        n_classes=C,
        n_pix=B * HW,
        n_emb=B * ee * HW,
    )

    total, emb_loss = pl.pallas_call(
        kernel,
        out_shape=(jax.ShapeDtypeStruct((1, 1), jnp.float32),
                   jax.ShapeDtypeStruct((1, 1), jnp.float32)),
        grid=(B, n_tiles),
        in_specs=[
            pl.BlockSpec((1, C, TILE), lambda b, t: (b, 0, t)),
            pl.BlockSpec((1, 1, TILE), lambda b, t: (b, 0, t)),
            pl.BlockSpec((1, ee, TILE), lambda b, t: (b, 0, t)),
            pl.BlockSpec((1, ee, TILE), lambda b, t: (b, 0, t)),
        ],
        out_specs=(pl.BlockSpec((1, 1), lambda b, t: (0, 0)),
                   pl.BlockSpec((1, 1), lambda b, t: (0, 0))),
        scratch_shapes=[pltpu.VMEM((1, 1), jnp.float32),
                        pltpu.VMEM((1, 1), jnp.float32)],
        compiler_params=pltpu.CompilerParams(
            dimension_semantics=("arbitrary", "arbitrary")),
    )(logits3d, tgt3d, emb3d, emb_tgt3d)

    total = total[0, 0]
    emb_loss = emb_loss[0, 0]
    if return_embedding_loss:
        return total, emb_loss
    return total


def _reference(embedding_space, outputs, target, embedding_target,
               lambda_embedding=1.0, lambda_classifier=1.0):
    """Plain-JAX reference for a sanity check."""
    B, C, H, W = outputs.shape
    logits = jnp.transpose(outputs, (0, 2, 3, 1)).reshape(-1, C).astype(jnp.float32)
    tgt = target[:, 0, :, :].reshape(-1).astype(jnp.int32)
    lse = jax.scipy.special.logsumexp(logits, axis=-1)
    picked = jnp.take_along_axis(logits, tgt[:, None], axis=-1)[:, 0]
    ce = jnp.mean(lse - picked)
    mse = jnp.mean((embedding_space.astype(jnp.float32)
                    - embedding_target.astype(jnp.float32)) ** 2)
    return lambda_embedding * mse + lambda_classifier * ce / C


if __name__ == "__main__":
    key = jax.random.PRNGKey(0)
    k1, k2, k3, k4 = jax.random.split(key, 4)

    B, C, H, W = 2, 4, 16, 16          # outputs: classifier logits, C classes
    E = 8                              # embedding channels

    outputs = jax.random.normal(k1, (B, C, H, W), dtype=jnp.float32)
    target = jax.random.randint(k2, (B, 1, H, W), 0, C, dtype=jnp.int32)
    embedding_space = jax.random.normal(k3, (B, E, H, W), dtype=jnp.float32)
    embedding_target = jax.random.normal(k4, (B, E, H, W), dtype=jnp.float32)

    total, emb_loss = total_loss(embedding_space, outputs, target, embedding_target,
                                 return_embedding_loss=True)
    total = jax.block_until_ready(total)
    emb_loss = jax.block_until_ready(emb_loss)

    ref = _reference(embedding_space, outputs, target, embedding_target)
    assert jnp.allclose(total, ref, rtol=1e-5, atol=1e-5), (total, ref)

    ref_mse = jnp.mean((embedding_space - embedding_target) ** 2)  # lambda_embedding = 1
    assert jnp.allclose(emb_loss, ref_mse, rtol=1e-5, atol=1e-5), (emb_loss, ref_mse)

    print("KERNEL_OK")
</pallas_src>

<mosaic_0001>
module attributes {stable_mosaic.version = 11 : i64} {
  func.func @_total_loss_kernel(%arg0: i32, %arg1: i32, %arg2: memref<1x4x256xf32, #tpu.memory_space<vmem>>, %arg3: memref<1x1x256xi32, #tpu.memory_space<vmem>>, %arg4: memref<1x8x256xf32, #tpu.memory_space<vmem>>, %arg5: memref<1x8x256xf32, #tpu.memory_space<vmem>>, %arg6: memref<1x1xf32, #tpu.memory_space<vmem>>, %arg7: memref<1x1xf32, #tpu.memory_space<vmem>>, %arg8: memref<1x1xf32, #tpu.memory_space<vmem>>, %arg9: memref<1x1xf32, #tpu.memory_space<vmem>>) attributes {dimension_semantics = [#tpu.dimension_semantics<arbitrary>, #tpu.dimension_semantics<arbitrary>], iteration_bounds = array<i64: 2, 1>, scalar_prefetch = 0 : i64, scratch_operands = 2 : i64, tpu.core_type = #tpu.core_type<tc>, window_params = [{transform_indices = @transform_0, window_bounds = array<i64: 1, 4, 256>}, {transform_indices = @transform_1, window_bounds = array<i64: 1, 1, 256>}, {transform_indices = @transform_2, window_bounds = array<i64: 1, 8, 256>}, {transform_indices = @transform_3, window_bounds = array<i64: 1, 8, 256>}, {pipeline_mode = #tpu.pipeline_mode<synchronous>, transform_indices = @transform_4, window_bounds = array<i64: 1, 1>}, {pipeline_mode = #tpu.pipeline_mode<synchronous>, transform_indices = @transform_5, window_bounds = array<i64: 1, 1>}]} {
    %c0_i32 = arith.constant 0 : i32
    %0 = arith.cmpi eq, %arg0, %c0_i32 : i32
    %c0_i32_0 = arith.constant 0 : i32
    %1 = arith.cmpi eq, %arg1, %c0_i32_0 : i32
    %2 = arith.andi %0, %1 : i1
    %3 = arith.extui %2 : i1 to i32
    %c0_i32_1 = arith.constant 0 : i32
    %4 = arith.cmpi ne, %3, %c0_i32_1 : i32
    scf.if %4 {
      %cst_29 = arith.constant 0.000000e+00 : f32
      %49 = vector.broadcast %cst_29 : f32 to vector<1x1xf32>
      %c0_30 = arith.constant 0 : index
      %c0_31 = arith.constant 0 : index
      %50 = vector.load %arg8[%c0_30, %c0_31] : memref<1x1xf32, #tpu.memory_space<vmem>>, vector<1x1xf32>
      tpu.vector_store %arg8[%c0_30, %c0_31], %49 {strides = array<i32>} : memref<1x1xf32, #tpu.memory_space<vmem>>, vector<1x1xf32>,
      %cst_32 = arith.constant 0.000000e+00 : f32
      %51 = vector.broadcast %cst_32 : f32 to vector<1x1xf32>
      %c0_33 = arith.constant 0 : index
      %c0_34 = arith.constant 0 : index
      %52 = vector.load %arg9[%c0_33, %c0_34] : memref<1x1xf32, #tpu.memory_space<vmem>>, vector<1x1xf32>
      tpu.vector_store %arg9[%c0_33, %c0_34], %51 {strides = array<i32>} : memref<1x1xf32, #tpu.memory_space<vmem>>, vector<1x1xf32>,
    } else {
    }
    %c0 = arith.constant 0 : index
    %c0_2 = arith.constant 0 : index
    %c0_3 = arith.constant 0 : index
    %5 = vector.load %arg2[%c0, %c0_2, %c0_3] : memref<1x4x256xf32, #tpu.memory_space<vmem>>, vector<1x4x256xf32>
    %6 = vector.shape_cast %5 : vector<1x4x256xf32> to vector<4x256xf32>
    %c0_4 = arith.constant 0 : index
    %c0_5 = arith.constant 0 : index
    %c0_6 = arith.constant 0 : index
    %7 = vector.load %arg3[%c0_4, %c0_5, %c0_6] : memref<1x1x256xi32, #tpu.memory_space<vmem>>, vector<1x1x256xi32>
    %8 = vector.shape_cast %7 : vector<1x1x256xi32> to vector<1x256xi32>
    %cst = arith.constant dense<0xFF800000> : vector<256xf32>
    %9 = vector.multi_reduction <maximumf>, %6, %cst [0] : vector<4x256xf32> to vector<256xf32>
    %10 = vector.shape_cast %9 : vector<256xf32> to vector<1x256xf32>
    %11 = vector.broadcast %10 : vector<1x256xf32> to vector<4x256xf32>
    %12 = arith.subf %6, %11 : vector<4x256xf32>
    %13 = math.exp %12 : vector<4x256xf32>
    %cst_7 = arith.constant dense<0.000000e+00> : vector<256xf32>
    %14 = vector.multi_reduction <add>, %13, %cst_7 [0] : vector<4x256xf32> to vector<256xf32>
    %15 = vector.shape_cast %14 : vector<256xf32> to vector<1x256xf32>
    %16 = math.log %15 : vector<1x256xf32>
    %17 = arith.addf %10, %16 : vector<1x256xf32>
    %18 = tpu.iota {dimensions = array<i32: 0>} : vector<4x256xi32>
    %19 = vector.broadcast %8 : vector<1x256xi32> to vector<4x256xi32>
    %20 = arith.cmpi eq, %18, %19 : vector<4x256xi32>
    %cst_8 = arith.constant 0.000000e+00 : f32
    %21 = vector.broadcast %cst_8 : f32 to vector<4x256xf32>
    %22 = arith.select %20, %6, %21 : vector<4x256xi1>, vector<4x256xf32>
    %cst_9 = arith.constant dense<0.000000e+00> : vector<256xf32>
    %23 = vector.multi_reduction <add>, %22, %cst_9 [0] : vector<4x256xf32> to vector<256xf32>
    %24 = vector.shape_cast %23 : vector<256xf32> to vector<1x256xf32>
    %c0_10 = arith.constant 0 : index
    %c0_11 = arith.constant 0 : index
    %25 = vector.load %arg8[%c0_10, %c0_11] : memref<1x1xf32, #tpu.memory_space<vmem>>, vector<1x1xf32>
    %26 = arith.subf %17, %24 : vector<1x256xf32>
    %cst_12 = arith.constant dense<0.000000e+00> : vector<1xf32>
    %27 = vector.multi_reduction <add>, %26, %cst_12 [1] : vector<1x256xf32> to vector<1xf32>
    %28 = vector.shape_cast %27 : vector<1xf32> to vector<1x1xf32>
    %29 = arith.addf %25, %28 : vector<1x1xf32>
    %c0_13 = arith.constant 0 : index
    %c0_14 = arith.constant 0 : index
    %30 = vector.load %arg8[%c0_13, %c0_14] : memref<1x1xf32, #tpu.memory_space<vmem>>, vector<1x1xf32>
    tpu.vector_store %arg8[%c0_13, %c0_14], %29 {strides = array<i32>} : memref<1x1xf32, #tpu.memory_space<vmem>>, vector<1x1xf32>,
    %c0_15 = arith.constant 0 : index
    %c0_16 = arith.constant 0 : index
    %c0_17 = arith.constant 0 : index
    %31 = vector.load %arg4[%c0_15, %c0_16, %c0_17] : memref<1x8x256xf32, #tpu.memory_space<vmem>>, vector<1x8x256xf32>
    %32 = vector.shape_cast %31 : vector<1x8x256xf32> to vector<8x256xf32>
    %c0_18 = arith.constant 0 : index
    %c0_19 = arith.constant 0 : index
    %c0_20 = arith.constant 0 : index
    %33 = vector.load %arg5[%c0_18, %c0_19, %c0_20] : memref<1x8x256xf32, #tpu.memory_space<vmem>>, vector<1x8x256xf32>
    %34 = vector.shape_cast %33 : vector<1x8x256xf32> to vector<8x256xf32>
    %35 = arith.subf %32, %34 : vector<8x256xf32>
    %36 = arith.mulf %35, %35 : vector<8x256xf32>
    %c0_21 = arith.constant 0 : index
    %c0_22 = arith.constant 0 : index
    %37 = vector.load %arg9[%c0_21, %c0_22] : memref<1x1xf32, #tpu.memory_space<vmem>>, vector<1x1xf32>
    %cst_23 = arith.constant dense<0.000000e+00> : vector<256xf32>
    %38 = vector.multi_reduction <add>, %36, %cst_23 [0] : vector<8x256xf32> to vector<256xf32>
    %39 = vector.shape_cast %38 : vector<256xf32> to vector<1x256xf32>
    %cst_24 = arith.constant dense<0.000000e+00> : vector<1xf32>
    %40 = vector.multi_reduction <add>, %39, %cst_24 [1] : vector<1x256xf32> to vector<1xf32>
    %41 = vector.shape_cast %40 : vector<1xf32> to vector<1x1xf32>
    %42 = arith.addf %37, %41 : vector<1x1xf32>
    %c0_25 = arith.constant 0 : index
    %c0_26 = arith.constant 0 : index
    %43 = vector.load %arg9[%c0_25, %c0_26] : memref<1x1xf32, #tpu.memory_space<vmem>>, vector<1x1xf32>
    tpu.vector_store %arg9[%c0_25, %c0_26], %42 {strides = array<i32>} : memref<1x1xf32, #tpu.memory_space<vmem>>, vector<1x1xf32>,
    %c1_i32 = arith.constant 1 : i32
    %44 = arith.cmpi eq, %arg0, %c1_i32 : i32
    %c0_i32_27 = arith.constant 0 : i32
    %45 = arith.cmpi eq, %arg1, %c0_i32_27 : i32
    %46 = arith.andi %44, %45 : i1
    %47 = arith.extui %46 : i1 to i32
    %c0_i32_28 = arith.constant 0 : i32
    %48 = arith.cmpi ne, %47, %c0_i32_28 : i32
    scf.if %48 {
      %c0_29 = arith.constant 0 : index
      %c0_30 = arith.constant 0 : index
      %49 = vector.load %arg9[%c0_29, %c0_30] : memref<1x1xf32, #tpu.memory_space<vmem>>, vector<1x1xf32>
      %cst_31 = arith.constant 2.44140625E-4 : f32
      %50 = vector.broadcast %cst_31 : f32 to vector<1x1xf32>
      %51 = arith.mulf %50, %49 : vector<1x1xf32>
      %c0_32 = arith.constant 0 : index
      %c0_33 = arith.constant 0 : index
      %52 = vector.load %arg8[%c0_32, %c0_33] : memref<1x1xf32, #tpu.memory_space<vmem>>, vector<1x1xf32>
      %cst_34 = arith.constant 4.8828125E-4 : f32
      %53 = vector.broadcast %cst_34 : f32 to vector<1x1xf32>
      %54 = arith.mulf %53, %52 : vector<1x1xf32>
      %55 = arith.addf %51, %54 : vector<1x1xf32>
      %c0_35 = arith.constant 0 : index
      %c0_36 = arith.constant 0 : index
      %56 = vector.load %arg6[%c0_35, %c0_36] : memref<1x1xf32, #tpu.memory_space<vmem>>, vector<1x1xf32>
      tpu.vector_store %arg6[%c0_35, %c0_36], %55 {strides = array<i32>} : memref<1x1xf32, #tpu.memory_space<vmem>>, vector<1x1xf32>,
      %c0_37 = arith.constant 0 : index
      %c0_38 = arith.constant 0 : index
      %57 = vector.load %arg7[%c0_37, %c0_38] : memref<1x1xf32, #tpu.memory_space<vmem>>, vector<1x1xf32>
      tpu.vector_store %arg7[%c0_37, %c0_38], %51 {strides = array<i32>} : memref<1x1xf32, #tpu.memory_space<vmem>>, vector<1x1xf32>,
    } else {
    }
    return
  }
  func.func @transform_0(%arg0: i32, %arg1: i32) -> (i32, i32, i32) {
    %c0_i32 = arith.constant 0 : i32
    %c0_i32_0 = arith.constant 0 : i32
    return %arg0, %c0_i32, %arg1 : i32, i32, i32
  }
  func.func @transform_1(%arg0: i32, %arg1: i32) -> (i32, i32, i32) {
    %c0_i32 = arith.constant 0 : i32
    %c0_i32_0 = arith.constant 0 : i32
    return %arg0, %c0_i32, %arg1 : i32, i32, i32
  }
  func.func @transform_2(%arg0: i32, %arg1: i32) -> (i32, i32, i32) {
    %c0_i32 = arith.constant 0 : i32
    %c0_i32_0 = arith.constant 0 : i32
    return %arg0, %c0_i32, %arg1 : i32, i32, i32
  }
  func.func @transform_3(%arg0: i32, %arg1: i32) -> (i32, i32, i32) {
    %c0_i32 = arith.constant 0 : i32
    %c0_i32_0 = arith.constant 0 : i32
    return %arg0, %c0_i32, %arg1 : i32, i32, i32
  }
  func.func @transform_4(%arg0: i32, %arg1: i32) -> (i32, i32) {
    %c0_i32 = arith.constant 0 : i32
    %c0_i32_0 = arith.constant 0 : i32
    %c0_i32_1 = arith.constant 0 : i32
    return %c0_i32, %c0_i32_0 : i32, i32
  }
  func.func @transform_5(%arg0: i32, %arg1: i32) -> (i32, i32) {
    %c0_i32 = arith.constant 0 : i32
    %c0_i32_0 = arith.constant 0 : i32
    %c0_i32_1 = arith.constant 0 : i32
    return %c0_i32, %c0_i32_0 : i32, i32
  }
}

</mosaic_0001>

<llo_original>
// kernel: tpu_custom_call.1
$region0: #{tpu_custom_call.1}
  #allocation0 [shape = 'u32[]', space=smem, size = 0x4, offset = 0x4, fixed_abs, tag = 'smem constant byte address 0x4 - core index']
  #allocation1 [shape = 'u32[144,128]{1,0:T(1,128)}', space=vmem, size = 0x12000, scoped, tag = 'internal scratch']
  #allocation2 [shape = 'f32[1,1]{1,0:T(1,128)}', space=vmem, size = 0x200, scoped, tag = 'scratch operand']
  #allocation3 [shape = 'f32[1,1]{1,0:T(1,128)}', space=vmem, size = 0x200, scoped, tag = 'scratch operand']
  %s0 = inlined_call_operand.hbm [shape: f32[2,4,256], index: 0, kind: input, shape index: {}]
  %s1 = inlined_call_operand.hbm [shape: s32[2,1,256], index: 1, kind: input, shape index: {}]
  %s2 = inlined_call_operand.hbm [shape: f32[2,8,256], index: 2, kind: input, shape index: {}]
  %s3 = inlined_call_operand.hbm [shape: f32[2,8,256], index: 3, kind: input, shape index: {}]
  %s4 = inlined_call_operand.hbm [shape: f32[1,1], index: 4, kind: output, shape index: {0}]
  %s5 = inlined_call_operand.hbm [shape: f32[1,1], index: 5, kind: output, shape index: {1}]
  %6 = xla_tuple %s4, %s5
  %s7 = sld [smem:[#allocation0]]
  $region81: #{tpu_custom_call.1} parent=0
    _
  %s9 = ssub.s32 1, %s7
  %s10 = scalar_select 0, %s9, %s7
  $region1: #{tpu_custom_call.1} parent=0
    #allocation4 [shape = 'u8[8192]{0}', space=vmem, size = 0x2000, scoped, tag = 'input window, operand 0']
    #allocation5 [shape = 's32[2]{0}', space=sflag, size = 0x8, scoped, tag = 'scoped memory for tpu_custom_call.1']
    #allocation6 [shape = 's32[2]{0}', space=sflag, size = 0x8, scoped, tag = 'scoped memory for tpu_custom_call.1']
    #allocation7 [shape = 'u8[2048]{0}', space=vmem, size = 0x800, scoped, tag = 'input window, operand 1']
    #allocation8 [shape = 's32[2]{0}', space=sflag, size = 0x8, scoped, tag = 'scoped memory for tpu_custom_call.1']
    #allocation9 [shape = 'u8[16384]{0}', space=vmem, size = 0x4000, scoped, tag = 'input window, operand 2']
    #allocation10 [shape = 'u8[16384]{0}', space=vmem, size = 0x4000, scoped, tag = 'input window, operand 3']
    #allocation11 [shape = 's32[2]{0}', space=sflag, size = 0x8, scoped, tag = 'scoped memory for tpu_custom_call.1']
    #allocation12 [shape = 'u8[512]{0}', space=vmem, size = 0x400, scoped, tag = 'output window, operand 0, single buffered']
    #allocation13 [shape = 'u8[512]{0}', space=vmem, size = 0x400, scoped, tag = 'output window, operand 1, single buffered']
    #allocation14 [shape = 's32[1]{0}', space=sflag, size = 0x4, scoped, tag = 'scoped memory for tpu_custom_call.1']
    %11 = vsyncpa [#allocation5], 0
    %s12 = scalar_lea.sflag [#allocation5], 1
    %13 = vsyncpa %s12, 0
    %14 = vsyncpa [#allocation8], 0
    %s15 = scalar_lea.sflag [#allocation8], 1
    %16 = vsyncpa %s15, 0
    %17 = vsyncpa [#allocation11], 0
    %s18 = scalar_lea.sflag [#allocation11], 1
    %19 = vsyncpa %s18, 0
    %20 = vsyncpa [#allocation6], 0
    %21 = vsyncpa [#allocation14], 0
    loop: start=0, step=1, limit=4
    $region2: #{tpu_custom_call.1} parent=1 // loop_pre_header
      _
    $region3: #{tpu_custom_call.1} parent=1 // loop_header
      %s23 = sphi 0, %s27
      %p24 = scmp.ge.s32.totalorder %s23, 4
      %s30 = sphi 0, %s42
      %s31 = sphi 0, %s38
      %s32 = sphi 0, %s30
      %s33 = sphi 0, %s31
      %s34 = sphi 0, %s32
      %s35 = sphi 0, %s33
      %s47 = sphi 0, %s49
      %s50 = sphi 0, %s47
      %s51 = sphi 0, %s50
      %s67 = sphi 0, %s51
      %s75 = sphi 0, %s77
      %s78 = sphi 0, %s75
      %s79 = sphi 0, %s78
      %s95 = sphi 0, %s79
      %s103 = sphi 0, %s105
      %s106 = sphi 0, %s103
      %s107 = sphi 0, %s106
      %s123 = sphi 0, %s107
      %s131 = sphi 0, %s133
      %s134 = sphi 0, %s131
      %s135 = sphi 0, %s134
      %s151 = sphi 0, %s135
      %s155 = sphi 0, %s155
      %s157 = sphi 0, %s155
      %s158 = sphi 0, %s157
      %s172 = sphi 0, %s158
      %s176 = sphi 0, %s176
      %s178 = sphi 0, %s176
      %s179 = sphi 0, %s178
      %s193 = sphi 0, %s179
    $region4: #{tpu_custom_call.1} parent=1 // loop_header_branch
      %26 = sbr.rel (%p24) target = $region8
    $region5: #{tpu_custom_call.1} parent=1 // loop_body
      %s28 = ssub.s32 %s23, 1
      %s29 = ssub.s32 %s23, 2
      %s36 = sadd.s32 1, %s31
      %p37 = scmp.ge.s32.totalorder %s36, 1
      %s38 = scalar_select %p37, 0, %s36
      %s39 = sadd.s32 1, %s30
      %s40 = scalar_select %p37, %s39, %s30
      %p41 = scmp.ge.s32.totalorder %s40, 2
      %s42 = scalar_select %p41, 0, %s40
      %s43 = ssub.s32 %s30, %s42
      %s44 = ssub.s32 %s31, %s38
      %s45 = sor.u32 %s43, %s44
      %p46 = scmp.eq.s32.totalorder %s45, 0
      %s48 = sadd.s32 %s47, 1
      %s49 = scalar_select %p46, %s47, %s48
      %p52 = pneg %p46
      %p53 = scmp.eq.s32.totalorder %s23, 1
      %p54 = por %p52, %p53
      %p55 = scmp.ne.s32.totalorder %s47, %s50
      %p56 = scmp.eq.s32.totalorder %s23, 0
      %p57 = por %p55, %p56
      %p58 = scmp.ne.s32.totalorder %s47, %s50
      %p59 = scmp.eq.s32.totalorder %s28, 1
      %p60 = por %p58, %p59
      %p61 = scmp.ne.s32.totalorder %s50, %s51
      %p62 = scmp.eq.s32.totalorder %s28, 0
      %p63 = por %p61, %p62
      %p64 = scmp.ne.s32.totalorder %s50, %s51
      %p65 = scmp.eq.s32.totalorder %s29, 1
      %p66 = por %p64, %p65
      %p68 = scmp.ne.s32.totalorder %s51, %s67
      %p69 = scmp.eq.s32.totalorder %s29, 0
      %p70 = por %p68, %p69
      %s71 = ssub.s32 %s30, %s42
      %s72 = ssub.s32 %s31, %s38
      %s73 = sor.u32 %s71, %s72
      %p74 = scmp.eq.s32.totalorder %s73, 0
      %s76 = sadd.s32 %s75, 1
      %s77 = scalar_select %p74, %s75, %s76
      %p80 = pneg %p74
      %p81 = scmp.eq.s32.totalorder %s23, 1
      %p82 = por %p80, %p81
      %p83 = scmp.ne.s32.totalorder %s75, %s78
      %p84 = scmp.eq.s32.totalorder %s23, 0
      %p85 = por %p83, %p84
      %p86 = scmp.ne.s32.totalorder %s75, %s78
      %p87 = scmp.eq.s32.totalorder %s28, 1
      %p88 = por %p86, %p87
      %p89 = scmp.ne.s32.totalorder %s78, %s79
      %p90 = scmp.eq.s32.totalorder %s28, 0
      %p91 = por %p89, %p90
      %p92 = scmp.ne.s32.totalorder %s78, %s79
      %p93 = scmp.eq.s32.totalorder %s29, 1
      %p94 = por %p92, %p93
      %p96 = scmp.ne.s32.totalorder %s79, %s95
      %p97 = scmp.eq.s32.totalorder %s29, 0
      %p98 = por %p96, %p97
      %s99 = ssub.s32 %s30, %s42
      %s100 = ssub.s32 %s31, %s38
      %s101 = sor.u32 %s99, %s100
      %p102 = scmp.eq.s32.totalorder %s101, 0
      %s104 = sadd.s32 %s103, 1
      %s105 = scalar_select %p102, %s103, %s104
      %p108 = pneg %p102
      %p109 = scmp.eq.s32.totalorder %s23, 1
      %p110 = por %p108, %p109
      %p111 = scmp.ne.s32.totalorder %s103, %s106
      %p112 = scmp.eq.s32.totalorder %s23, 0
      %p113 = por %p111, %p112
      %p114 = scmp.ne.s32.totalorder %s103, %s106
      %p115 = scmp.eq.s32.totalorder %s28, 1
      %p116 = por %p114, %p115
      %p117 = scmp.ne.s32.totalorder %s106, %s107
      %p118 = scmp.eq.s32.totalorder %s28, 0
      %p119 = por %p117, %p118
      %p120 = scmp.ne.s32.totalorder %s106, %s107
      %p121 = scmp.eq.s32.totalorder %s29, 1
      %p122 = por %p120, %p121
      %p124 = scmp.ne.s32.totalorder %s107, %s123
      %p125 = scmp.eq.s32.totalorder %s29, 0
      %p126 = por %p124, %p125
      %s127 = ssub.s32 %s30, %s42
      %s128 = ssub.s32 %s31, %s38
      %s129 = sor.u32 %s127, %s128
      %p130 = scmp.eq.s32.totalorder %s129, 0
      %s132 = sadd.s32 %s131, 1
      %s133 = scalar_select %p130, %s131, %s132
      %p136 = pneg %p130
      %p137 = scmp.eq.s32.totalorder %s23, 1
      %p138 = por %p136, %p137
      %p139 = scmp.ne.s32.totalorder %s131, %s134
      %p140 = scmp.eq.s32.totalorder %s23, 0
      %p141 = por %p139, %p140
      %p142 = scmp.ne.s32.totalorder %s131, %s134
      %p143 = scmp.eq.s32.totalorder %s28, 1
      %p144 = por %p142, %p143
      %p145 = scmp.ne.s32.totalorder %s134, %s135
      %p146 = scmp.eq.s32.totalorder %s28, 0
      %p147 = por %p145, %p146
      %p148 = scmp.ne.s32.totalorder %s134, %s135
      %p149 = scmp.eq.s32.totalorder %s29, 1
      %p150 = por %p148, %p149
      %p152 = scmp.ne.s32.totalorder %s135, %s151
      %p153 = scmp.eq.s32.totalorder %s29, 0
      %p154 = por %p152, %p153
      %s156 = sadd.s32 %s155, 1
      %p159 = scmp.eq.s32.totalorder %s23, 1
      %p160 = scmp.ne.s32.totalorder %s155, %s157
      %p161 = scmp.eq.s32.totalorder %s23, 0
      %p162 = por %p160, %p161
      %p163 = scmp.ne.s32.totalorder %s155, %s157
      %p164 = scmp.eq.s32.totalorder %s28, 1
      %p165 = por %p163, %p164
      %p166 = scmp.ne.s32.totalorder %s157, %s158
      %p167 = scmp.eq.s32.totalorder %s28, 0
      %p168 = por %p166, %p167
      %p169 = scmp.ne.s32.totalorder %s157, %s158
      %p170 = scmp.eq.s32.totalorder %s29, 1
      %p171 = por %p169, %p170
      %p173 = scmp.ne.s32.totalorder %s158, %s172
      %p174 = scmp.eq.s32.totalorder %s29, 0
      %p175 = por %p173, %p174
      %s177 = sadd.s32 %s176, 1
      %p180 = scmp.eq.s32.totalorder %s23, 1
      %p181 = scmp.ne.s32.totalorder %s176, %s178
      %p182 = scmp.eq.s32.totalorder %s23, 0
      %p183 = por %p181, %p182
      %p184 = scmp.ne.s32.totalorder %s176, %s178
      %p185 = scmp.eq.s32.totalorder %s28, 1
      %p186 = por %p184, %p185
      %p187 = scmp.ne.s32.totalorder %s178, %s179
      %p188 = scmp.eq.s32.totalorder %s28, 0
      %p189 = por %p187, %p188
      %p190 = scmp.ne.s32.totalorder %s178, %s179
      %p191 = scmp.eq.s32.totalorder %s29, 1
      %p192 = por %p190, %p191
      %p194 = scmp.ne.s32.totalorder %s179, %s193
      %p195 = scmp.eq.s32.totalorder %s29, 0
      %p196 = por %p194, %p195
      %p197 = scmp.le.s32.totalorder 1, %s23
      %p198 = scmp.lt.s32.totalorder %s23, 3
      %p199 = pnand %p197, %p198
      %p200 = pneg %p199
      // Predicated region
      $region9: #{tpu_custom_call.1} parent=5 // pred_check
        _
      $region10: #{tpu_custom_call.1} parent=5 // pred_check_branch
        %202 = sbr.rel (%p199) target = $region12
      $region11: #{tpu_custom_call.1} parent=5 // pred_region
        %s203 = ssub.s32 %s23, 1
      $region12: #{tpu_custom_call.1} parent=5 // pred_fallthru
        _
      %p204 = scmp.lt.s32.totalorder %s23, 2
      // Predicated region
      $region13: #{tpu_custom_call.1} parent=5 // pred_check
        %p205 = pneg %p204
      $region14: #{tpu_custom_call.1} parent=5 // pred_check_branch
        %207 = sbr.rel (%p205) target = $region16
      $region15: #{tpu_custom_call.1} parent=5 // pred_region
        // Predicated region
        $region17: #{tpu_custom_call.1} parent=15 // pred_check
          %p208 = pneg %p57
        $region18: #{tpu_custom_call.1} parent=15 // pred_check_branch
          %210 = sbr.rel (%p208) target = $region20
        $region19: #{tpu_custom_call.1} parent=15 // pred_region
          %s211 = sand.u32 %s47, 1
          %s212 = scalar_lea.sflag [#allocation5], %s211
          %s213 = sand.u32 %s47, 1
          %s214 = smul.addr %s213, 8
          %s215 = scalar_lea.vmem [#allocation4], %s214
          %s216 = smul.u32 2, %s31
          %s218 = ssub.s32 128, 128
          %219 = vsyncadd %s212, %s218
          %s220 = smul.addr %s30, 2
          %s221 = sadd.s32 %s216, %s220
          %s222 = smul.addr %s221, 64
          %s223 = scalar_lea.hbm %s0, %s222
          %s225 = sshll.u32 %s215, 4
          %s226 = int_to_ptr.vmem [resolvable:$true] %s225
          %228 = dma.hbm_to_vmem [thread:$0]  %s223, 128, %s226, %s212
        $region20: #{tpu_custom_call.1} parent=15 // pred_fallthru
          _
        // Predicated region
        $region21: #{tpu_custom_call.1} parent=15 // pred_check
          %p229 = pneg %p85
        $region22: #{tpu_custom_call.1} parent=15 // pred_check_branch
          %231 = sbr.rel (%p229) target = $region24
        $region23: #{tpu_custom_call.1} parent=15 // pred_region
          %s232 = sand.u32 %s23, 1
          %s233 = scalar_lea.sflag [#allocation8], %s232
          %s234 = sand.u32 %s75, 1
          %s235 = smul.addr %s234, 2
          %s236 = scalar_lea.vmem [#allocation7], %s235
          %s237 = smul.u32 2, %s31
          %s239 = ssub.s32 32, 32
          %240 = vsyncadd %s233, %s239
          %s241 = smul.addr %s30, 2
          %s242 = sadd.s32 %s237, %s241
          %s243 = smul.addr %s242, 16
          %s244 = scalar_lea.hbm %s1, %s243
          %s246 = sshll.u32 %s236, 4
          %s247 = int_to_ptr.vmem [resolvable:$true] %s246
          %249 = dma.hbm_to_vmem [thread:$0]  %s244, 32, %s247, %s233
        $region24: #{tpu_custom_call.1} parent=15 // pred_fallthru
          _
        // Predicated region
        $region25: #{tpu_custom_call.1} parent=15 // pred_check
          %p250 = pneg %p113
        $region26: #{tpu_custom_call.1} parent=15 // pred_check_branch
          %252 = sbr.rel (%p250) target = $region28
        $region27: #{tpu_custom_call.1} parent=15 // pred_region
          %s253 = sand.u32 %s23, 1
          %s254 = scalar_lea.sflag [#allocation8], %s253
          %s255 = sand.u32 %s103, 1
          %s256 = smul.addr %s255, 16
          %s257 = scalar_lea.vmem [#allocation9], %s256
          %s258 = smul.u32 2, %s31
          %s260 = ssub.s32 256, 256
          %261 = vsyncadd %s254, %s260
          %s262 = smul.addr %s30, 2
          %s263 = sadd.s32 %s258, %s262
          %s264 = smul.addr %s263, 128
          %s265 = scalar_lea.hbm %s2, %s264
          %s267 = sshll.u32 %s257, 4
          %s268 = int_to_ptr.vmem [resolvable:$true] %s267
          %270 = dma.hbm_to_vmem [thread:$0]  %s265, 256, %s268, %s254
        $region28: #{tpu_custom_call.1} parent=15 // pred_fallthru
          _
        // Predicated region
        $region29: #{tpu_custom_call.1} parent=15 // pred_check
          %p271 = pneg %p141
        $region30: #{tpu_custom_call.1} parent=15 // pred_check_branch
          %273 = sbr.rel (%p271) target = $region32
        $region31: #{tpu_custom_call.1} parent=15 // pred_region
          %s274 = sand.u32 %s131, 1
          %s275 = scalar_lea.sflag [#allocation11], %s274
          %s276 = sand.u32 %s131, 1
          %s277 = smul.addr %s276, 16
          %s278 = scalar_lea.vmem [#allocation10], %s277
          %s279 = smul.u32 2, %s31
          %s281 = ssub.s32 256, 256
          %282 = vsyncadd %s275, %s281
          %s283 = smul.addr %s30, 2
          %s284 = sadd.s32 %s279, %s283
          %s285 = smul.addr %s284, 128
          %s286 = scalar_lea.hbm %s3, %s285
          %s288 = sshll.u32 %s278, 4
          %s289 = int_to_ptr.vmem [resolvable:$true] %s288
          %291 = dma.hbm_to_vmem [thread:$0]  %s286, 256, %s289, %s275
        $region32: #{tpu_custom_call.1} parent=15 // pred_fallthru
          _
      $region16: #{tpu_custom_call.1} parent=5 // pred_fallthru
        _
      %p292 = scmp.le.s32.totalorder 1, %s23
      %p293 = scmp.lt.s32.totalorder %s23, 3
      %p294 = pnand %p292, %p293
      %p295 = pneg %p294
      // Predicated region
      $region33: #{tpu_custom_call.1} parent=5 // pred_check
        _
      $region34: #{tpu_custom_call.1} parent=5 // pred_check_branch
        %297 = sbr.rel (%p294) target = $region36
      $region35: #{tpu_custom_call.1} parent=5 // pred_region
        %s298 = ssub.s32 %s23, 1
        %s299 = sand.u32 %s50, 1
        %s300 = scalar_lea.sflag [#allocation5], %s299
        %s301 = sand.u32 %s50, 1
        %s302 = smul.addr %s301, 8
        %s303 = scalar_lea.vmem [#allocation4], %s302
        // Predicated region
        $region37: #{tpu_custom_call.1} parent=35 // pred_check
          %p304 = pneg %p63
        $region38: #{tpu_custom_call.1} parent=35 // pred_check_branch
          %306 = sbr.rel (%p304) target = $region40
        $region39: #{tpu_custom_call.1} parent=35 // pred_region
          %307 = dma.done %s300, 128
        $region40: #{tpu_custom_call.1} parent=35 // pred_fallthru
          _
        %s308 = sand.u32 %s28, 1
        %s309 = scalar_lea.sflag [#allocation8], %s308
        %s310 = sand.u32 %s78, 1
        %s311 = smul.addr %s310, 2
        %s312 = scalar_lea.vmem [#allocation7], %s311
        // Predicated region
        $region41: #{tpu_custom_call.1} parent=35 // pred_check
          %p313 = pneg %p91
        $region42: #{tpu_custom_call.1} parent=35 // pred_check_branch
          %315 = sbr.rel (%p313) target = $region44
        $region43: #{tpu_custom_call.1} parent=35 // pred_region
          %316 = dma.done %s309, 32
        $region44: #{tpu_custom_call.1} parent=35 // pred_fallthru
          _
        %s317 = sand.u32 %s28, 1
        %s318 = scalar_lea.sflag [#allocation8], %s317
        %s319 = sand.u32 %s106, 1
        %s320 = smul.addr %s319, 16
        %s321 = scalar_lea.vmem [#allocation9], %s320
        // Predicated region
        $region45: #{tpu_custom_call.1} parent=35 // pred_check
          %p322 = pneg %p119
        $region46: #{tpu_custom_call.1} parent=35 // pred_check_branch
          %324 = sbr.rel (%p322) target = $region48
        $region47: #{tpu_custom_call.1} parent=35 // pred_region
          %325 = dma.done %s318, 256
        $region48: #{tpu_custom_call.1} parent=35 // pred_fallthru
          _
        %s326 = sand.u32 %s134, 1
        %s327 = scalar_lea.sflag [#allocation11], %s326
        %s328 = sand.u32 %s134, 1
        %s329 = smul.addr %s328, 16
        %s330 = scalar_lea.vmem [#allocation10], %s329
        // Predicated region
        $region49: #{tpu_custom_call.1} parent=35 // pred_check
          %p331 = pneg %p147
        $region50: #{tpu_custom_call.1} parent=35 // pred_check_branch
          %333 = sbr.rel (%p331) target = $region52
        $region51: #{tpu_custom_call.1} parent=35 // pred_region
          %334 = dma.done %s327, 256
        $region52: #{tpu_custom_call.1} parent=35 // pred_fallthru
          _
        %s335 = sand.u32 %s50, 1
        %s336 = scalar_lea.sflag [#allocation5], %s335
        %s337 = sand.u32 %s50, 1
        %s338 = smul.addr %s337, 8
        %s339 = scalar_lea.vmem [#allocation4], %s338
        %p340 = pneg %p63
        %p341 = pneg %p60
        %s342 = sand.u32 %s28, 1
        %s343 = scalar_lea.sflag [#allocation8], %s342
        %s344 = sand.u32 %s78, 1
        %s345 = smul.addr %s344, 2
        %s346 = scalar_lea.vmem [#allocation7], %s345
        %p347 = pneg %p91
        %p348 = pneg %p88
        %s349 = sand.u32 %s28, 1
        %s350 = scalar_lea.sflag [#allocation8], %s349
        %s351 = sand.u32 %s106, 1
        %s352 = smul.addr %s351, 16
        %s353 = scalar_lea.vmem [#allocation9], %s352
        %p354 = pneg %p119
        %p355 = pneg %p116
        %s356 = sand.u32 %s134, 1
        %s357 = scalar_lea.sflag [#allocation11], %s356
        %s358 = sand.u32 %s134, 1
        %s359 = smul.addr %s358, 16
        %s360 = scalar_lea.vmem [#allocation10], %s359
        %p361 = pneg %p147
        %p362 = pneg %p144
        %p363 = pneg %p168
        %p364 = pneg %p165
        %p365 = pneg %p189
        %p366 = pneg %p186
        %s367 = smul.u32 2, %s33
        %s368 = smul.u32 2, %s33
        %s369 = smul.u32 2, %s33
        %s370 = smul.u32 2, %s33
        %p371 = scmp.eq.s32.totalorder %s32, 0
        %p372 = scmp.eq.s32.totalorder %s33, 0
        %p373 = pnand %p371, %p372
        %p374 = pneg %p373
        // Predicated region
        $region53: #{tpu_custom_call.1} parent=35 // pred_check
          _
        $region54: #{tpu_custom_call.1} parent=35 // pred_check_branch
          %376 = sbr.rel (%p373) target = $region56
        $region55: #{tpu_custom_call.1} parent=35 // pred_region
          %vm377 = vcmask 0
          %378 = vst.msk [vmem:[#allocation2] sm:$0x1] %vm377, 0.0
          %379 = vst.msk [vmem:[#allocation3] sm:$0x1] %vm377, 0.0
        $region56: #{tpu_custom_call.1} parent=35 // pred_fallthru
          _
        %v380 = vld [vmem:[%s303] sm:$0xff]
        %v381 = vld [vmem:[%s312] sm:$0x3]
        %v383 = vcombine.high %v380, %v380
        %vm385 = vcmask 1043456
        %v386 = vsel %vm385, %v380, -inf
        %v387 = vrot.slane %v386, 4
        %v388 = vmax.f32 %v386, %v387
        %v389 = vrot.slane %v388, 2
        %v390 = vmax.f32 %v388, %v389
        %v391 = vrot.slane %v390, 1
        %v392 = vmax.f32 %v390, %v391
        %v393 = vsel %vm385, %v383, -inf
        %v394 = vrot.slane %v393, 4
        %v395 = vmax.f32 %v393, %v394
        %v396 = vrot.slane %v395, 2
        %v397 = vmax.f32 %v395, %v396
        %v398 = vrot.slane %v397, 1
        %v399 = vmax.f32 %v397, %v398
        %v402 = vcombine.low %v392, %v399
        %v404 = vsub.f32 %v380, %v402
        %v405 = vmul.f32 %v404, 1.442695
        %v406 = vpow.pop %v405
        %v408 = vcombine.high %v406, %v406
        %v410 = vsel %vm385, %v406, 0.0
        %v411 = vrot.slane %v410, 4
        %v412 = vadd.f32 %v410, %v411
        %v413 = vrot.slane %v412, 2
        %v414 = vadd.f32 %v412, %v413
        %v415 = vrot.slane %v414, 1
        %v416 = vadd.f32 %v414, %v415
        %v417 = vsel %vm385, %v408, 0.0
        %v418 = vrot.slane %v417, 4
        %v419 = vadd.f32 %v417, %v418
        %v420 = vrot.slane %v419, 2
        %v421 = vadd.f32 %v419, %v420
        %v422 = vrot.slane %v421, 1
        %v423 = vadd.f32 %v421, %v422
        %v424 = vlog2.pop %v416
        %v425 = vmul.f32 %v424, 0.6931472
        %v426 = vlog2.pop %v423
        %v427 = vmul.f32 %v426, 0.6931472
        %v428 = vadd.f32 %v392, %v425
        %v429 = vadd.f32 %v399, %v427
        %v430 = vlaneseq
        %v431 = vshrl.u32 %v430, 7
        %v432 = vlaneseq
        %v433 = vshrl.u32 %v432, 7
        %v434 = vsub.s32 0, %v433
        %v435 = vrot.slane %v381, %v434
        %v436 = vlaneseq
        %v437 = vshrl.u32 %v436, 7
        %v438 = vsub.s32 1, %v437
        %v439 = vrot.slane %v381, %v438
        %vm440 = vcmp.eq.s32.totalorder %v431, %v435
        %vm441 = vcmp.eq.s32.totalorder %v431, %v439
        %v442 = vsel %vm440, %v380, 0.0
        %v443 = vsel %vm441, %v383, 0.0
        %v444 = vsel %vm385, %v442, 0.0
        %v445 = vrot.slane %v444, 4
        %v446 = vadd.f32 %v444, %v445
        %v447 = vrot.slane %v446, 2
        %v448 = vadd.f32 %v446, %v447
        %v449 = vrot.slane %v448, 1
        %v450 = vadd.f32 %v448, %v449
        %v451 = vsel %vm385, %v443, 0.0
        %v452 = vrot.slane %v451, 4
        %v453 = vadd.f32 %v451, %v452
        %v454 = vrot.slane %v453, 2
        %v455 = vadd.f32 %v453, %v454
        %v456 = vrot.slane %v455, 1
        %v457 = vadd.f32 %v455, %v456
        %v458 = vld [vmem:[#allocation2] sm:$0x1]
        %v459 = vsub.f32 %v428, %v450
        %v460 = vsub.f32 %v429, %v457
        %v461 = vadd.f32 %v459, %v460
        %462 = vadd.xlane.f32.xlu0 %v461
        %v463 = vpop.xlane.xlu0 %462
        %v464 = vadd.f32 %v458, %v463
        %vm465 = vcmask 0
        %466 = vst.msk [vmem:[#allocation2] sm:$0x1] %vm465, %v464
        %v467 = vld [vmem:[%s321] sm:$0xff]
        %v468 = vld [vmem:[%s321 + $0x8] sm:$0xff]
        %v469 = vld [vmem:[%s330] sm:$0xff]
        %v470 = vld [vmem:[%s330 + $0x8] sm:$0xff]
        %v471 = vsub.f32 %v467, %v469
        %v472 = vsub.f32 %v468, %v470
        %v473 = vmul.f32 %v471, %v471
        %v474 = vmul.f32 %v472, %v472
        %v475 = vld [vmem:[#allocation3] sm:$0x1]
        %v476 = vrot.slane %v473, 4
        %v477 = vadd.f32 %v473, %v476
        %v478 = vrot.slane %v477, 2
        %v479 = vadd.f32 %v477, %v478
        %v480 = vrot.slane %v479, 1
        %v481 = vadd.f32 %v479, %v480
        %v482 = vrot.slane %v474, 4
        %v483 = vadd.f32 %v474, %v482
        %v484 = vrot.slane %v483, 2
        %v485 = vadd.f32 %v483, %v484
        %v486 = vrot.slane %v485, 1
        %v487 = vadd.f32 %v485, %v486
        %v488 = vadd.f32 %v481, %v487
        %489 = vadd.xlane.f32.xlu0 %v488
        %v490 = vpop.xlane.xlu0 %489
        %v491 = vadd.f32 %v475, %v490
        %492 = vst.msk [vmem:[#allocation3] sm:$0x1] %vm465, %v491
        %p493 = scmp.eq.s32.totalorder %s32, 1
        %p494 = pnand %p493, %p372
        %p495 = pneg %p494
        // Predicated region
        $region57: #{tpu_custom_call.1} parent=35 // pred_check
          _
        $region58: #{tpu_custom_call.1} parent=35 // pred_check_branch
          %497 = sbr.rel (%p494) target = $region60
        $region59: #{tpu_custom_call.1} parent=35 // pred_region
          %v498 = vld [vmem:[#allocation3] sm:$0x1]
          %v499 = vmul.f32 %v498, 0.00024414063
          %v500 = vld [vmem:[#allocation2] sm:$0x1]
          %v501 = vmul.f32 %v500, 0.00048828125
          %v502 = vadd.f32 %v499, %v501
          %503 = vst.msk [vmem:[#allocation12] sm:$0x1] %vm465, %v502
          %504 = vst.msk [vmem:[#allocation13] sm:$0x1] %vm465, %v499
        $region60: #{tpu_custom_call.1} parent=35 // pred_fallthru
          _
        // Predicated region
        $region61: #{tpu_custom_call.1} parent=35 // pred_check
          %p505 = pneg %p165
        $region62: #{tpu_custom_call.1} parent=35 // pred_check_branch
          %507 = sbr.rel (%p505) target = $region64
        $region63: #{tpu_custom_call.1} parent=35 // pred_region
          %s509 = ssub.s32 16, 16
          %510 = vsyncadd [#allocation6], %s509
          %s512 = sshll.u32 [#allocation12], 4
          %s513 = int_to_ptr.vmem [resolvable:$true] %s512
          %515 = dma.vmem_to_hbm [thread:$0]  %s513, 16, %s4, [#allocation6]
        $region64: #{tpu_custom_call.1} parent=35 // pred_fallthru
          _
        // Predicated region
        $region65: #{tpu_custom_call.1} parent=35 // pred_check
          %p516 = pneg %p186
        $region66: #{tpu_custom_call.1} parent=35 // pred_check_branch
          %518 = sbr.rel (%p516) target = $region68
        $region67: #{tpu_custom_call.1} parent=35 // pred_region
          %s520 = ssub.s32 16, 16
          %521 = vsyncadd [#allocation14], %s520
          %s523 = sshll.u32 [#allocation13], 4
          %s524 = int_to_ptr.vmem [resolvable:$true] %s523
          %526 = dma.vmem_to_hbm [thread:$0]  %s524, 16, %s5, [#allocation14]
        $region68: #{tpu_custom_call.1} parent=35 // pred_fallthru
          _
        // Predicated region
        $region69: #{tpu_custom_call.1} parent=35 // pred_check
          %p527 = pneg %p165
        $region70: #{tpu_custom_call.1} parent=35 // pred_check_branch
          %529 = sbr.rel (%p527) target = $region72
        $region71: #{tpu_custom_call.1} parent=35 // pred_region
          %530 = dma.done [#allocation6], 16
        $region72: #{tpu_custom_call.1} parent=35 // pred_fallthru
          _
        // Predicated region
        $region73: #{tpu_custom_call.1} parent=35 // pred_check
          %p531 = pneg %p186
        $region74: #{tpu_custom_call.1} parent=35 // pred_check_branch
          %533 = sbr.rel (%p531) target = $region76
        $region75: #{tpu_custom_call.1} parent=35 // pred_region
          %534 = dma.done [#allocation14], 16
        $region76: #{tpu_custom_call.1} parent=35 // pred_fallthru
          _
      $region36: #{tpu_custom_call.1} parent=5 // pred_fallthru
        _
      %p535 = scmp.le.s32.totalorder 2, %s23
      // Predicated region
      $region77: #{tpu_custom_call.1} parent=5 // pred_check
        %p536 = pneg %p535
      $region78: #{tpu_custom_call.1} parent=5 // pred_check_branch
        %538 = sbr.rel (%p536) target = $region80
      $region79: #{tpu_custom_call.1} parent=5 // pred_region
        %s539 = ssub.s32 %s23, 2
      $region80: #{tpu_custom_call.1} parent=5 // pred_fallthru
        _
    $region6: #{tpu_custom_call.1} parent=1 // loop_footer
      %s27 = sadd.s32 1, %s23
    $region7: #{tpu_custom_call.1} parent=1 // loop_footer_branch
      %22 = sbr.rel target = $region3
    $region8: #{tpu_custom_call.1} parent=1 // loop_exit
      _
    %540 = vsyncpa [#allocation5], 1
    %s541 = scalar_lea.sflag [#allocation5], 1
    %542 = vsyncpa %s541, 1
    %543 = vsyncpa [#allocation8], 1
    %s544 = scalar_lea.sflag [#allocation8], 1
    %545 = vsyncpa %s544, 1
    %546 = vsyncpa [#allocation11], 1
    %s547 = scalar_lea.sflag [#allocation11], 1
    %548 = vsyncpa %s547, 1
    %549 = vsyncpa [#allocation6], 1
    %s550 = scalar_lea.sflag [#allocation6], 1
    %551 = vsyncpa %s550, 1
    %552 = vsyncpa [#allocation14], 1

</llo_original>
